<compile_context>
chip_gen: v7x
topology: tpu7x:2x2x1
jax: 0.10.0
libtpu: 0.0.40
codegen_flags: <defaults>
</compile_context>

<pallas_src>
import jax
import jax.numpy as jnp
from jax.experimental import pallas as pl
from jax.experimental.pallas import tpu as pltpu

LANES = 128
MAX_BLOCK_ROWS = 2048  # 2048 x 128 x 4B = 1 MiB per input block (f32)


def _round_up(x, m):
    return ((x + m - 1) // m) * m


def _adv_loss_kernel(rows_ref, yf_ref, y_ref, out_ref):
    """Per-block partial sum of log(y * (1 - y_fake)).

    rows_ref : (1,) int32 in SMEM (scalar prefetch) -- number of valid rows.
    yf_ref   : (BLOCK_ROWS, LANES) tile of y_fake (native dtype) in VMEM.
    y_ref    : (BLOCK_ROWS, LANES) tile of y      (native dtype) in VMEM.
    out_ref  : (1, LANES) f32 per-block partial column sums.
    """
    i = pl.program_id(0)
    block_rows = yf_ref.shape[0]

    # Global row index of every element in this block; rows >= rows_ref[0]
    # belong to the (unspecified-content) partial-block tail and are masked.
    row_ids = jax.lax.broadcasted_iota(jnp.int32, (block_rows, LANES), 0)
    valid = (row_ids + i * block_rows) < rows_ref[0]

    yf = yf_ref[...].astype(jnp.float32)
    yy = y_ref[...].astype(jnp.float32)

    # Fused transcendental: log(y) + log(1 - y_fake) == log(y * (1 - y_fake)).
    # One EUP push per element instead of two; VPU does the mul/sub/select.
    term = jnp.log(yy * (1.0 - yf))
    term = jnp.where(valid, term, 0.0)

    # Per-lane partial sums for this block (inter-vreg VPU adds + one
    # cross-sublane reduce).  Cross-block combine happens in the wrapper.
    out_ref[...] = jnp.sum(term, axis=0, keepdims=True)


def adversarial_loss(y_fake, y):
    """mean(log(y) + log(1 - y_fake)) computed with a Pallas TPU kernel.

    Accepts arbitrary matching shapes (e.g. NCHW discriminator maps) in f32
    or bf16.  Returns a float32 scalar.
    """
    assert y_fake.shape == y.shape, "y_fake and y must have the same shape"
    n_true = int(y.size)
    assert n_true > 0

    # Flatten in native dtype (pure reshape, no HBM copy for aligned sizes).
    yf_flat = jnp.ravel(y_fake)
    y_flat = jnp.ravel(y)

    # Lane-alignment pad only (<= 127 elements) with neutral values:
    # y = 1, y_fake = 0  ->  log(1 * (1 - 0)) = 0 contributes nothing.
    pad = (-n_true) % LANES
    if pad:
        yf_flat = jnp.concatenate([yf_flat, jnp.zeros((pad,), yf_flat.dtype)])
        y_flat = jnp.concatenate([y_flat, jnp.ones((pad,), y_flat.dtype)])

    rows = (n_true + pad) // LANES
    yf2d = yf_flat.reshape(rows, LANES)
    y2d = y_flat.reshape(rows, LANES)

    # Block rows: as large as MAX_BLOCK_ROWS, multiple of 16 (covers f32 and
    # bf16 sublane packing); the row-direction tail is masked in-kernel.
    block_rows = min(MAX_BLOCK_ROWS, _round_up(rows, 16))
    num_blocks = pl.cdiv(rows, block_rows)

    rows_smem = jnp.array([rows], dtype=jnp.int32)

    bytes_in = yf2d.size * yf2d.dtype.itemsize + y2d.size * y2d.dtype.itemsize
    bytes_out = num_blocks * LANES * 4

    partials = pl.pallas_call(
        _adv_loss_kernel,
        out_shape=jax.ShapeDtypeStruct((num_blocks, LANES), jnp.float32),
        grid_spec=pltpu.PrefetchScalarGridSpec(
            num_scalar_prefetch=1,
            grid=(num_blocks,),
            in_specs=[
                pl.BlockSpec((block_rows, LANES), lambda i, rows_ref: (i, 0)),
                pl.BlockSpec((block_rows, LANES), lambda i, rows_ref: (i, 0)),
            ],
            out_specs=pl.BlockSpec((1, LANES), lambda i, rows_ref: (i, 0)),
        ),
        compiler_params=pltpu.CompilerParams(
            dimension_semantics=("parallel",),
        ),
        cost_estimate=pl.CostEstimate(
            flops=3 * n_true,            # sub, mul, reduce-add per element
            transcendentals=n_true,      # one fused log per element
            bytes_accessed=bytes_in + bytes_out,
        ),
    )(rows_smem, yf2d, y2d)

    # Tiny final reduction + mean outside the kernel (keeps the grid parallel).
    return jnp.sum(partials) / jnp.float32(n_true)


if __name__ == "__main__":
    key = jax.random.PRNGKey(0)
    k1, k2 = jax.random.split(key)

    # Discriminator-style NCHW outputs in (0, 1), e.g. post-sigmoid probabilities.
    shape = (2, 4, 16, 16)
    y_fake = jax.random.uniform(k1, shape, jnp.float32, minval=0.05, maxval=0.95)
    y = jax.random.uniform(k2, shape, jnp.float32, minval=0.05, maxval=0.95)

    loss = adversarial_loss(y_fake, y)
    loss = jax.block_until_ready(loss)

    # Reference check against plain JAX (matches torch.mean(log(y)+log(1-y_fake))).
    ref = jnp.mean(jnp.log(y) + jnp.log(1.0 - y_fake))
    assert jnp.allclose(loss, ref, rtol=1e-5, atol=1e-6), (loss, ref)

    print("KERNEL_OK")
</pallas_src>

<mosaic_0001>
module attributes {stable_mosaic.version = 11 : i64} {
  func.func @_adv_loss_kernel(%arg0: i32, %arg1: memref<1xi32, #tpu.memory_space<smem>>, %arg2: memref<16x128xf32, #tpu.memory_space<vmem>>, %arg3: memref<16x128xf32, #tpu.memory_space<vmem>>, %arg4: memref<1x128xf32, #tpu.memory_space<vmem>>) attributes {dimension_semantics = [#tpu.dimension_semantics<parallel>], iteration_bounds = array<i64: 1>, scalar_prefetch = 1 : i64, scratch_operands = 0 : i64, tpu.core_type = #tpu.core_type<tc>, window_params = [{transform_indices = @transform_0, window_bounds = array<i64: 16, 128>}, {transform_indices = @transform_1, window_bounds = array<i64: 16, 128>}, {transform_indices = @transform_2, window_bounds = array<i64: 1, 128>}]} {
    %0 = tpu.iota {dimensions = array<i32: 0>} : vector<16x128xi32>
    %c16_i32 = arith.constant 16 : i32
    %1 = arith.muli %arg0, %c16_i32 : i32
    %2 = vector.broadcast %1 : i32 to vector<16x128xi32>
    %3 = arith.addi %0, %2 : vector<16x128xi32>
    %c0 = arith.constant 0 : index
    %4 = memref.load %arg1[%c0] : memref<1xi32, #tpu.memory_space<smem>>
    %5 = vector.broadcast %4 : i32 to vector<16x128xi32>
    %6 = arith.cmpi slt, %3, %5 : vector<16x128xi32>
    %c0_0 = arith.constant 0 : index
    %c0_1 = arith.constant 0 : index
    %7 = vector.load %arg2[%c0_0, %c0_1] : memref<16x128xf32, #tpu.memory_space<vmem>>, vector<16x128xf32>
    %c0_2 = arith.constant 0 : index
    %c0_3 = arith.constant 0 : index
    %8 = vector.load %arg3[%c0_2, %c0_3] : memref<16x128xf32, #tpu.memory_space<vmem>>, vector<16x128xf32>
    %cst = arith.constant 1.000000e+00 : f32
    %9 = vector.broadcast %cst : f32 to vector<16x128xf32>
    %10 = arith.subf %9, %7 : vector<16x128xf32>
    %11 = arith.mulf %8, %10 : vector<16x128xf32>
    %12 = math.log %11 : vector<16x128xf32>
    %cst_4 = arith.constant 0.000000e+00 : f32
    %13 = vector.broadcast %cst_4 : f32 to vector<16x128xf32>
    %14 = arith.select %6, %12, %13 : vector<16x128xi1>, vector<16x128xf32>
    %cst_5 = arith.constant dense<0.000000e+00> : vector<128xf32>
    %15 = vector.multi_reduction <add>, %14, %cst_5 [0] : vector<16x128xf32> to vector<128xf32>
    %16 = vector.shape_cast %15 : vector<128xf32> to vector<1x128xf32>
    %c0_6 = arith.constant 0 : index
    %c0_7 = arith.constant 0 : index
    %17 = vector.load %arg4[%c0_6, %c0_7] : memref<1x128xf32, #tpu.memory_space<vmem>>, vector<1x128xf32>
    tpu.vector_store %arg4[%c0_6, %c0_7], %16 {strides = array<i32>} : memref<1x128xf32, #tpu.memory_space<vmem>>, vector<1x128xf32>,
    return
  }
  func.func @transform_0(%arg0: i32, %arg1: memref<1xi32, #tpu.memory_space<smem>>) -> (i32, i32) {
    %c0_i32 = arith.constant 0 : i32
    %c0_i32_0 = arith.constant 0 : i32
    return %arg0, %c0_i32 : i32, i32
  }
  func.func @transform_1(%arg0: i32, %arg1: memref<1xi32, #tpu.memory_space<smem>>) -> (i32, i32) {
    %c0_i32 = arith.constant 0 : i32
    %c0_i32_0 = arith.constant 0 : i32
    return %arg0, %c0_i32 : i32, i32
  }
  func.func @transform_2(%arg0: i32, %arg1: memref<1xi32, #tpu.memory_space<smem>>) -> (i32, i32) {
    %c0_i32 = arith.constant 0 : i32
    %c0_i32_0 = arith.constant 0 : i32
    return %arg0, %c0_i32 : i32, i32
  }
}

</mosaic_0001>

<llo_original>
// kernel: tpu_custom_call.1
$region0: #{tpu_custom_call.1}
  #allocation0 [shape = 'u32[]', space=smem, size = 0x4, offset = 0x4, fixed_abs, tag = 'smem constant byte address 0x4 - core index']
  #allocation1 [shape = 'u32[144,128]{1,0:T(1,128)}', space=vmem, size = 0x12000, scoped, tag = 'internal scratch']
  #allocation2 [shape = 's32[1]{0}', space=sflag, size = 0x4, scoped, tag = 'scoped memory for tpu_custom_call.1']
  #allocation3 [shape = 's32[1]{0:T(128)S(6)}', space=smem, size = 0x200, scoped, tag = 'prefetched SMEM operand 0']
  %s0 = inlined_call_operand.<no memory space> [shape: s32[1], index: 0, kind: input, shape index: {}]
  %s1 = inlined_call_operand.hbm [shape: f32[16,128], index: 1, kind: input, shape index: {}]
  %s2 = inlined_call_operand.hbm [shape: f32[16,128], index: 2, kind: input, shape index: {}]
  %s3 = inlined_call_operand.hbm [shape: f32[1,128], index: 3, kind: output, shape index: {}]
  %s4 = sld [smem:[#allocation0]]
  $region26: #{tpu_custom_call.1} parent=0
    _
  %s6 = ssub.s32 1, %s4
  %s7 = scalar_select 0, %s6, %s4
  %8 = sst [smem:[#allocation3]] %s0
  $region1: #{tpu_custom_call.1} parent=0
    #allocation4 [shape = 'u8[8192]{0}', space=vmem, size = 0x2000, scoped, tag = 'input window, operand 1, single buffered']
    #allocation5 [shape = 's32[1]{0}', space=sflag, size = 0x4, scoped, tag = 'scoped memory for tpu_custom_call.1']
    #allocation6 [shape = 's32[1]{0}', space=sflag, size = 0x4, scoped, tag = 'scoped memory for tpu_custom_call.1']
    #allocation7 [shape = 'u8[8192]{0}', space=vmem, size = 0x2000, scoped, tag = 'input window, operand 2, single buffered']
    #allocation8 [shape = 's32[1]{0}', space=sflag, size = 0x4, scoped, tag = 'scoped memory for tpu_custom_call.1']
    #allocation9 [shape = 'u8[512]{0}', space=vmem, size = 0x400, scoped, tag = 'output window, operand 0, single buffered']
    %9 = vsyncpa [#allocation5], 0
    %10 = vsyncpa [#allocation8], 0
    %11 = vsyncpa [#allocation6], 0
    // Predicated region
    $region2: #{tpu_custom_call.1} parent=1 // pred_check
      _
    $region3: #{tpu_custom_call.1} parent=1 // pred_check_branch
      %13 = sbr.rel (0) target = $region5
    $region4: #{tpu_custom_call.1} parent=1 // pred_region
      %s15 = ssub.s32 256, 256
      %16 = vsyncadd [#allocation5], %s15
      %s17 = sshll.u32 [#allocation4], 4
      %s18 = int_to_ptr.vmem [resolvable:$true] %s17
      %23 = dma.hbm_to_vmem [thread:$0]  %s1, 256, %s18, [#allocation5], 128, 128, 8
    $region5: #{tpu_custom_call.1} parent=1 // pred_fallthru
      _
    // Predicated region
    $region6: #{tpu_custom_call.1} parent=1 // pred_check
      _
    $region7: #{tpu_custom_call.1} parent=1 // pred_check_branch
      %25 = sbr.rel (0) target = $region9
    $region8: #{tpu_custom_call.1} parent=1 // pred_region
      %s27 = ssub.s32 256, 256
      %28 = vsyncadd [#allocation8], %s27
      %s29 = sshll.u32 [#allocation7], 4
      %s30 = int_to_ptr.vmem [resolvable:$true] %s29
      %35 = dma.hbm_to_vmem [thread:$0]  %s2, 256, %s30, [#allocation8], 128, 128, 8
    $region9: #{tpu_custom_call.1} parent=1 // pred_fallthru
      _
    // Predicated region
    $region10: #{tpu_custom_call.1} parent=1 // pred_check
      _
    $region11: #{tpu_custom_call.1} parent=1 // pred_check_branch
      %37 = sbr.rel (0) target = $region13
    $region12: #{tpu_custom_call.1} parent=1 // pred_region
      %38 = dma.done [#allocation5], 256
    $region13: #{tpu_custom_call.1} parent=1 // pred_fallthru
      _
    // Predicated region
    $region14: #{tpu_custom_call.1} parent=1 // pred_check
      _
    $region15: #{tpu_custom_call.1} parent=1 // pred_check_branch
      %40 = sbr.rel (0) target = $region17
    $region16: #{tpu_custom_call.1} parent=1 // pred_region
      %41 = dma.done [#allocation8], 256
    $region17: #{tpu_custom_call.1} parent=1 // pred_fallthru
      _
    %v42 = vlaneseq
    %v43 = vshrl.u32 %v42, 7
    %v44 = vadd.s32 %v43, 8
    %s45 = smul.u32 0, 16
    %v46 = vstv %s45
    %v47 = vadd.s32 %v43, %v46
    %v48 = vadd.s32 %v44, %v46
    %s49 = sld [smem:[#allocation3]]
    %v50 = vstv %s49
    %vm51 = vcmp.lt.s32.totalorder %v47, %v50
    %vm52 = vcmp.lt.s32.totalorder %v48, %v50
    %v53 = vld [vmem:[#allocation4] sm:$0xff]
    %v54 = vld [vmem:[#allocation4 + $0x8] sm:$0xff]
    %v55 = vld [vmem:[#allocation7] sm:$0xff]
    %v56 = vld [vmem:[#allocation7 + $0x8] sm:$0xff]
    %v57 = vsub.f32 1.0, %v53
    %v58 = vsub.f32 1.0, %v54
    %v59 = vmul.f32 %v55, %v57
    %v60 = vmul.f32 %v56, %v58
    %v61 = vlog2.pop %v59
    %v62 = vmul.f32 %v61, 0.6931472
    %v63 = vlog2.pop %v60
    %v64 = vmul.f32 %v63, 0.6931472
    %v65 = vsel %vm51, %v62, 0.0
    %v66 = vsel %vm52, %v64, 0.0
    %v67 = vadd.f32 %v65, %v66
    %v68 = vrot.slane %v67, 4
    %v69 = vadd.f32 %v67, %v68
    %v70 = vrot.slane %v69, 2
    %v71 = vadd.f32 %v69, %v70
    %v72 = vrot.slane %v71, 1
    %v73 = vadd.f32 %v71, %v72
    %74 = vst [vmem:[#allocation9] sm:$0x1] %v73
    // Predicated region
    $region18: #{tpu_custom_call.1} parent=1 // pred_check
      _
    $region19: #{tpu_custom_call.1} parent=1 // pred_check_branch
      %76 = sbr.rel (0) target = $region21
    $region20: #{tpu_custom_call.1} parent=1 // pred_region
      %s78 = ssub.s32 16, 16
      %79 = vsyncadd [#allocation6], %s78
      %s81 = sshll.u32 [#allocation9], 4
      %s82 = int_to_ptr.vmem [resolvable:$true] %s81
      %84 = dma.vmem_to_hbm [thread:$0]  %s82, 16, %s3, [#allocation6]
    $region21: #{tpu_custom_call.1} parent=1 // pred_fallthru
      _
    // Predicated region
    $region22: #{tpu_custom_call.1} parent=1 // pred_check
      _
    $region23: #{tpu_custom_call.1} parent=1 // pred_check_branch
      %86 = sbr.rel (0) target = $region25
    $region24: #{tpu_custom_call.1} parent=1 // pred_region
      %87 = dma.done [#allocation6], 16
    $region25: #{tpu_custom_call.1} parent=1 // pred_fallthru
      _
    %88 = vsyncpa [#allocation5], 1
    %89 = vsyncpa [#allocation8], 1
    %90 = vsyncpa [#allocation6], 1

</llo_original>
